<compile_context>
chip_gen: v6e
topology: v6e:2x2x1
jax: 0.10.0
libtpu: 0.0.40
codegen_flags: <defaults>
</compile_context>

<pallas_src>
import jax
import jax.numpy as jnp
from jax.experimental import pallas as pl
from jax.experimental.pallas import tpu as pltpu


MID_DIM = 128   # hardcoded in the PyTorch module
LANE = 128      # TPU lane width
SUBLANE = 8     # TPU sublane width


def _round_up(x, m):
    return (x + m - 1) // m * m


def _mlp_kernel(x_ref, w1_ref, b1_ref, w2_ref, b2_ref, o_ref):
    # x_ref:  (tm, in_dim)             x.dtype (f32 typically)
    # w1_ref: (in_dim, MID_DIM)        bf16 (default) or f32
    # b1_ref: (1, MID_DIM)             f32
    # w2_ref: (MID_DIM, out_dim)       bf16 (default) or f32
    # b2_ref: (1, out_dim)             f32
    # o_ref:  (tm, out_dim)            x.dtype
    x = x_ref[...]
    if x.dtype != w1_ref.dtype:
        x = x.astype(w1_ref.dtype)                     # bf16 MXU inputs
    h = jnp.dot(x, w1_ref[...], preferred_element_type=jnp.float32)
    h = jnp.maximum(h + b1_ref[...], 0.0)              # bias + ReLU in f32
    y = jnp.dot(h.astype(w2_ref.dtype), w2_ref[...],
                preferred_element_type=jnp.float32)
    o_ref[...] = (y + b2_ref[...]).astype(o_ref.dtype)


def _choose_tile_rows(M, in_dim, out_dim, x_itemsize, w_itemsize,
                      vmem_budget, max_tm=1024):
    """Smallest grid count that fits the VMEM budget, minimal row padding,
    even step count (v7x 2-TensorCore balance) when more than one step."""
    in_l = _round_up(in_dim, LANE)     # VMEM lane padding of narrow dims
    out_l = _round_up(out_dim, LANE)

    # Fixed bytes: weights/biases, conservatively counted as double-buffered.
    # TODO(synk): pass pipeline_mode=pl.Buffered(1) on the constant-index
    # weight blocks to reclaim this VMEM for very large in_dim.
    fixed = (2 * (in_l * MID_DIM + MID_DIM * out_l) * w_itemsize
             + 2 * (MID_DIM + out_l) * 4)
    # Per-row bytes: double-buffered x / out tiles + in-kernel intermediates.
    per_row = (2 * in_l * x_itemsize           # x tile (double-buffered)
               + 2 * out_l * x_itemsize        # out tile (double-buffered, lane-padded)
               + in_l * w_itemsize             # x cast to bf16 for the MXU
               + MID_DIM * (4 + w_itemsize)    # h (f32) + h bf16 cast
               + out_l * 4)                    # y (f32)

    fit_rows = max(SUBLANE, (vmem_budget - fixed) // per_row)
    fit_rows = max(SUBLANE, fit_rows // SUBLANE * SUBLANE)

    if M <= min(max_tm, fit_rows):
        return M                               # single tile == full array, no padding
    ng = pl.cdiv(M, min(max_tm, fit_rows))
    ng = max(ng, 2)
    if ng % 2:                                 # keep both v7x TensorCores busy
        ng += 1
    return _round_up(pl.cdiv(M, ng), SUBLANE)  # waste < 8 rows per grid step


def point_predictor_forward(x, w1, b1, w2, b2, *, tm=None,
                            use_bf16_matmul=True,
                            vmem_budget=20 * 1024 * 1024):
    """x: [..., in_dim] -> [..., out_dim]   (two-layer MLP with ReLU)."""
    orig_dtype = x.dtype
    in_dim = x.shape[-1]
    out_dim = w2.shape[-1]
    lead_shape = x.shape[:-1]

    x2d = x.reshape(-1, in_dim)
    M = x2d.shape[0]

    # bf16 MXU path (default for f32 inputs): matmuls run at native bf16 MXU
    # rate and weight HBM reads are halved; accumulation stays f32.
    w_dtype = jnp.bfloat16 if (use_bf16_matmul and orig_dtype == jnp.float32) \
        else orig_dtype
    w1c = w1.astype(w_dtype)
    w2c = w2.astype(w_dtype)
    b1r = b1.astype(jnp.float32).reshape(1, MID_DIM)
    b2r = b2.astype(jnp.float32).reshape(1, out_dim)

    x_itemsize = jnp.dtype(orig_dtype).itemsize
    w_itemsize = jnp.dtype(w_dtype).itemsize

    if tm is None:
        tm = _choose_tile_rows(M, in_dim, out_dim, x_itemsize, w_itemsize,
                               vmem_budget)
    tm = min(tm, M)
    if tm < M:
        tm = _round_up(tm, SUBLANE)
    ng = pl.cdiv(M, tm)   # ragged last block handled by Pallas: OOB rows read
                          # garbage, OOB output rows are masked on write.

    flops = 2 * M * (in_dim * MID_DIM + MID_DIM * out_dim)
    bytes_accessed = (
        M * in_dim * x_itemsize                                  # x read
        + (in_dim * MID_DIM + MID_DIM * out_dim) * w_itemsize    # W1, W2
        + (MID_DIM + out_dim) * 4                                # b1, b2
        + M * out_dim * x_itemsize                               # output write
    )

    out = pl.pallas_call(
        _mlp_kernel,
        out_shape=jax.ShapeDtypeStruct((M, out_dim), orig_dtype),
        grid=(ng,),
        in_specs=[
            pl.BlockSpec((tm, in_dim), lambda i: (i, 0)),         # x row tile
            pl.BlockSpec((in_dim, MID_DIM), lambda i: (0, 0)),    # W1 (constant)
            pl.BlockSpec((1, MID_DIM), lambda i: (0, 0)),         # b1
            pl.BlockSpec((MID_DIM, out_dim), lambda i: (0, 0)),   # W2 (constant)
            pl.BlockSpec((1, out_dim), lambda i: (0, 0)),         # b2
        ],
        out_specs=pl.BlockSpec((tm, out_dim), lambda i: (i, 0)),  # unpadded output
        compiler_params=pltpu.CompilerParams(
            dimension_semantics=("parallel",),
            vmem_limit_bytes=32 * 1024 * 1024),
        cost_estimate=pl.CostEstimate(
            flops=flops, transcendentals=0, bytes_accessed=bytes_accessed),
    )(x2d, w1c, b1r, w2c, b2r)

    return out.reshape(*lead_shape, out_dim)


def init_params(key, in_dim, out_dim, dtype=jnp.float32):
    """Deterministic init mimicking nn.Linear's uniform(-1/sqrt(fan_in), ...)."""
    k1, k2, k3, k4 = jax.random.split(key, 4)
    bound1 = 1.0 / jnp.sqrt(in_dim)
    bound2 = 1.0 / jnp.sqrt(MID_DIM)
    # Stored already transposed: [in, out]
    w1 = jax.random.uniform(k1, (in_dim, MID_DIM), dtype, -bound1, bound1)
    b1 = jax.random.uniform(k2, (MID_DIM,), dtype, -bound1, bound1)
    w2 = jax.random.uniform(k3, (MID_DIM, out_dim), dtype, -bound2, bound2)
    b2 = jax.random.uniform(k4, (out_dim,), dtype, -bound2, bound2)
    return w1, b1, w2, b2


def _reference(x, w1, b1, w2, b2):
    h = jnp.maximum(x @ w1 + b1, 0.0)
    return h @ w2 + b2


if __name__ == "__main__":
    key = jax.random.PRNGKey(0)
    batch, seq, in_dim, out_dim = 2, 8, 32, 4

    kx, kp, kx2 = jax.random.split(key, 3)
    w1, b1, w2, b2 = init_params(kp, in_dim, out_dim)

    x = jax.random.normal(kx, (batch, seq, in_dim), jnp.float32)
    y_ref = _reference(x, w1, b1, w2, b2)

    # Exact f32 MXU path (matches the PyTorch module's f32 numerics).
    y_f32 = jax.block_until_ready(
        point_predictor_forward(x, w1, b1, w2, b2, use_bf16_matmul=False))
    assert y_f32.shape == (batch, seq, out_dim)
    assert jnp.allclose(y_f32, y_ref, atol=1e-5, rtol=1e-5)

    # Default bf16-MXU path (f32 accumulation) — relaxed tolerance.
    y_bf16 = jax.block_until_ready(point_predictor_forward(x, w1, b1, w2, b2))
    assert y_bf16.shape == (batch, seq, out_dim)
    assert jnp.allclose(y_bf16, y_ref, atol=3e-2, rtol=3e-2)

    # Larger, non-divisible row count: multi-tile grid + ragged last block
    # (no wrapper-side row padding any more).
    x_big = jax.random.normal(kx2, (3, 401, in_dim), jnp.float32)
    y_big = jax.block_until_ready(point_predictor_forward(x_big, w1, b1, w2, b2))
    y_big_ref = _reference(x_big, w1, b1, w2, b2)
    assert y_big.shape == (3, 401, out_dim)
    assert jnp.allclose(y_big, y_big_ref, atol=3e-2, rtol=3e-2)

    print("KERNEL_OK")
</pallas_src>

<mosaic_0001>
module attributes {stable_mosaic.version = 11 : i64} {
  func.func @_mlp_kernel(%arg0: i32, %arg1: memref<16x32xf32, #tpu.memory_space<vmem>>, %arg2: memref<32x128xf32, #tpu.memory_space<vmem>>, %arg3: memref<1x128xf32, #tpu.memory_space<vmem>>, %arg4: memref<128x4xf32, #tpu.memory_space<vmem>>, %arg5: memref<1x4xf32, #tpu.memory_space<vmem>>, %arg6: memref<16x4xf32, #tpu.memory_space<vmem>>) attributes {dimension_semantics = [#tpu.dimension_semantics<parallel>], iteration_bounds = array<i64: 1>, scalar_prefetch = 0 : i64, scratch_operands = 0 : i64, tpu.core_type = #tpu.core_type<tc>, window_params = [{transform_indices = @transform_0, window_bounds = array<i64: 16, 32>}, {pipeline_mode = #tpu.pipeline_mode<synchronous>, transform_indices = @transform_1, window_bounds = array<i64: 32, 128>}, {pipeline_mode = #tpu.pipeline_mode<synchronous>, transform_indices = @transform_2, window_bounds = array<i64: 1, 128>}, {pipeline_mode = #tpu.pipeline_mode<synchronous>, transform_indices = @transform_3, window_bounds = array<i64: 128, 4>}, {pipeline_mode = #tpu.pipeline_mode<synchronous>, transform_indices = @transform_4, window_bounds = array<i64: 1, 4>}, {transform_indices = @transform_5, window_bounds = array<i64: 16, 4>}]} {
    %c0 = arith.constant 0 : index
    %c0_0 = arith.constant 0 : index
    %0 = vector.load %arg1[%c0, %c0_0] : memref<16x32xf32, #tpu.memory_space<vmem>>, vector<16x32xf32>
    %c0_1 = arith.constant 0 : index
    %c0_2 = arith.constant 0 : index
    %1 = vector.load %arg2[%c0_1, %c0_2] : memref<32x128xf32, #tpu.memory_space<vmem>>, vector<32x128xf32>
    %cst = arith.constant dense<0.000000e+00> : vector<16x128xf32>
    %2 = tpu.matmul %0, %1, %cst {dimension_numbers = #tpu.dot_dimension_numbers<[1], [0], [0], [1], [0, 0, 1, 1], [], []>} : vector<16x32xf32>, vector<32x128xf32>, vector<16x128xf32> -> vector<16x128xf32>
    %c0_3 = arith.constant 0 : index
    %c0_4 = arith.constant 0 : index
    %3 = vector.load %arg3[%c0_3, %c0_4] : memref<1x128xf32, #tpu.memory_space<vmem>>, vector<1x128xf32>
    %4 = vector.broadcast %3 : vector<1x128xf32> to vector<16x128xf32>
    %5 = arith.addf %2, %4 : vector<16x128xf32>
    %cst_5 = arith.constant 0.000000e+00 : f32
    %6 = vector.broadcast %cst_5 : f32 to vector<16x128xf32>
    %7 = arith.maximumf %5, %6 : vector<16x128xf32>
    %c0_6 = arith.constant 0 : index
    %c0_7 = arith.constant 0 : index
    %8 = vector.load %arg4[%c0_6, %c0_7] : memref<128x4xf32, #tpu.memory_space<vmem>>, vector<128x4xf32>
    %cst_8 = arith.constant dense<0.000000e+00> : vector<16x4xf32>
    %9 = tpu.matmul %7, %8, %cst_8 {dimension_numbers = #tpu.dot_dimension_numbers<[1], [0], [0], [1], [0, 0, 1, 1], [], []>} : vector<16x128xf32>, vector<128x4xf32>, vector<16x4xf32> -> vector<16x4xf32>
    %c0_9 = arith.constant 0 : index
    %c0_10 = arith.constant 0 : index
    %10 = vector.load %arg5[%c0_9, %c0_10] : memref<1x4xf32, #tpu.memory_space<vmem>>, vector<1x4xf32>
    %11 = vector.broadcast %10 : vector<1x4xf32> to vector<16x4xf32>
    %12 = arith.addf %9, %11 : vector<16x4xf32>
    %c0_11 = arith.constant 0 : index
    %c0_12 = arith.constant 0 : index
    %13 = vector.load %arg6[%c0_11, %c0_12] : memref<16x4xf32, #tpu.memory_space<vmem>>, vector<16x4xf32>
    tpu.vector_store %arg6[%c0_11, %c0_12], %12 {strides = array<i32>} : memref<16x4xf32, #tpu.memory_space<vmem>>, vector<16x4xf32>,
    return
  }
  func.func @transform_0(%arg0: i32) -> (i32, i32) {
    %c0_i32 = arith.constant 0 : i32
    %c0_i32_0 = arith.constant 0 : i32
    return %arg0, %c0_i32 : i32, i32
  }
  func.func @transform_1(%arg0: i32) -> (i32, i32) {
    %c0_i32 = arith.constant 0 : i32
    %c0_i32_0 = arith.constant 0 : i32
    %c0_i32_1 = arith.constant 0 : i32
    return %c0_i32, %c0_i32_0 : i32, i32
  }
  func.func @transform_2(%arg0: i32) -> (i32, i32) {
    %c0_i32 = arith.constant 0 : i32
    %c0_i32_0 = arith.constant 0 : i32
    %c0_i32_1 = arith.constant 0 : i32
    return %c0_i32, %c0_i32_0 : i32, i32
  }
  func.func @transform_3(%arg0: i32) -> (i32, i32) {
    %c0_i32 = arith.constant 0 : i32
    %c0_i32_0 = arith.constant 0 : i32
    %c0_i32_1 = arith.constant 0 : i32
    return %c0_i32, %c0_i32_0 : i32, i32
  }
  func.func @transform_4(%arg0: i32) -> (i32, i32) {
    %c0_i32 = arith.constant 0 : i32
    %c0_i32_0 = arith.constant 0 : i32
    %c0_i32_1 = arith.constant 0 : i32
    return %c0_i32, %c0_i32_0 : i32, i32
  }
  func.func @transform_5(%arg0: i32) -> (i32, i32) {
    %c0_i32 = arith.constant 0 : i32
    %c0_i32_0 = arith.constant 0 : i32
    return %arg0, %c0_i32 : i32, i32
  }
}

</mosaic_0001>

<llo_original>
// kernel: tpu_custom_call.1
$region0: #{tpu_custom_call.1}
  #allocation0 [shape = 'u32[]', space=smem, size = 0x4, offset = 0x4, fixed_abs, tag = 'smem constant byte address 0x4 - core index']
  #allocation1 [shape = 'u32[144,128]{1,0:T(1,128)}', space=vmem, size = 0x12000, scoped, tag = 'internal scratch']
  %s0 = inlined_call_operand.vmem [shape: f32[16,32], index: 0, kind: input, shape index: {}]
  %s1 = inlined_call_operand.vmem [shape: f32[32,128], index: 1, kind: input, shape index: {}]
  %s2 = inlined_call_operand.vmem [shape: f32[1,128], index: 2, kind: input, shape index: {}]
  %s3 = inlined_call_operand.vmem [shape: f32[128,4], index: 3, kind: input, shape index: {}]
  %s4 = inlined_call_operand.vmem [shape: f32[1,4], index: 4, kind: input, shape index: {}]
  %s5 = inlined_call_operand.vmem [shape: f32[16,4], index: 5, kind: output, shape index: {}]
  %s6 = sld [smem:[#allocation0]]
  $region30: #{tpu_custom_call.1} parent=0
    _
  %s8 = ssub.s32 1, %s6
  %s9 = scalar_select 0, %s8, %s6
  // Predicated region
  $region2: #{tpu_custom_call.1} parent=0 // pred_check
    _
  $region3: #{tpu_custom_call.1} parent=0 // pred_check_branch
    %11 = sbr.rel (0) target = $region5
  $region4: #{tpu_custom_call.1} parent=0 // pred_region
    _
  $region5: #{tpu_custom_call.1} parent=0 // pred_fallthru
    _
  // Predicated region
  $region6: #{tpu_custom_call.1} parent=0 // pred_check
    _
  $region7: #{tpu_custom_call.1} parent=0 // pred_check_branch
    %13 = sbr.rel (0) target = $region9
  $region8: #{tpu_custom_call.1} parent=0 // pred_region
    _
  $region9: #{tpu_custom_call.1} parent=0 // pred_fallthru
    _
  // Predicated region
  $region10: #{tpu_custom_call.1} parent=0 // pred_check
    _
  $region11: #{tpu_custom_call.1} parent=0 // pred_check_branch
    %15 = sbr.rel (0) target = $region13
  $region12: #{tpu_custom_call.1} parent=0 // pred_region
    _
  $region13: #{tpu_custom_call.1} parent=0 // pred_fallthru
    _
  // Predicated region
  $region14: #{tpu_custom_call.1} parent=0 // pred_check
    _
  $region15: #{tpu_custom_call.1} parent=0 // pred_check_branch
    %17 = sbr.rel (0) target = $region17
  $region16: #{tpu_custom_call.1} parent=0 // pred_region
    _
  $region17: #{tpu_custom_call.1} parent=0 // pred_fallthru
    _
  // Predicated region
  $region18: #{tpu_custom_call.1} parent=0 // pred_check
    _
  $region19: #{tpu_custom_call.1} parent=0 // pred_check_branch
    %19 = sbr.rel (0) target = $region21
  $region20: #{tpu_custom_call.1} parent=0 // pred_region
    _
  $region21: #{tpu_custom_call.1} parent=0 // pred_fallthru
    _
  %v20 = vld [vmem:[%s0] sm:$0xff]
  %v21 = vld [vmem:[%s0 + $0x8] sm:$0xff]
  %v22 = vld [vmem:[%s1] sm:$0xff]
  %v23 = vld [vmem:[%s1 + $0x8] sm:$0xff]
  %v24 = vld [vmem:[%s1 + $0x10] sm:$0xff]
  %v25 = vld [vmem:[%s1 + $0x18] sm:$0xff]
  %v26 = vld [vmem:[%s2] sm:$0x1]
  %v28 = vlaneseq
  %v29 = vshrl.u32 %v28, 7
  %v30 = vsub.s32 0, %v29
  %v31 = vrot.slane %v26, %v30
  %vm33 = vcmask 261120
  %v35 = vsel %vm33, %v20, 0
  %v38 = vsel %vm33, %v21, 0
  %40 = vmatprep.subr.mxu0 0.0
  %41 = vmatpush1.msra.mxu0 0.0
  %42 = vmatprep.subr.mxu0 0.0
  %43 = vmatpush1.msra.mxu0 0.0
  %44 = vmatprep.subr.mxu0 0.0
  %45 = vmatpush1.msra.mxu0 0.0
  %46 = vmatprep.subr.mxu0 0.0
  %47 = vmatpush1.msra.mxu0 0.0
  %48 = vmatprep.subr.mxu0 0.0
  %49 = vmatpush1.msra.mxu0 0.0
  %50 = vmatprep.subr.mxu0 0.0
  %51 = vmatpush1.msra.mxu0 0.0
  %52 = vmatprep.subr.mxu0 0.0
  %53 = vmatpush1.msra.mxu0 0.0
  %54 = vmatprep.subr.mxu0 0.0
  %55 = vmatpush1.msra.mxu0 0.0
  %56 = vmatprep.subr.mxu0 0.0
  %57 = vmatpush1.msra.mxu0 0.0
  %58 = vmatprep.subr.mxu0 0.0
  %59 = vmatpush1.msra.mxu0 0.0
  %60 = vmatprep.subr.mxu0 0.0
  %61 = vmatpush1.msra.mxu0 0.0
  %62 = vmatprep.subr.mxu0 0.0
  %63 = vmatpush1.msra.mxu0 0.0
  %64 = vmatprep.subr.mxu0 0.0
  %65 = vmatpush1.msra.mxu0 %v25
  %66 = vmatprep.subr.mxu0 0.0
  %67 = vmatpush1.msra.mxu0 %v24
  %68 = vmatprep.subr.mxu0 0.0
  %69 = vmatpush1.msra.mxu0 %v23
  %70 = vmatprep.subr.mxu0 0.0
  %71 = vmatpush1.msra.mxu0 %v22
  %72 = vmatprep.subr.mxu0 0.0
  %73 = vmatpush2.msra.mxu0 0.0
  %74 = vmatprep.subr.mxu0 0.0
  %75 = vmatpush2.msra.mxu0 0.0
  %76 = vmatprep.subr.mxu0 0.0
  %77 = vmatpush2.msra.mxu0 0.0
  %78 = vmatprep.subr.mxu0 0.0
  %79 = vmatpush2.msra.mxu0 0.0
  %80 = vmatprep.subr.mxu0 0.0
  %81 = vmatpush2.msra.mxu0 0.0
  %82 = vmatprep.subr.mxu0 0.0
  %83 = vmatpush2.msra.mxu0 0.0
  %84 = vmatprep.subr.mxu0 0.0
  %85 = vmatpush2.msra.mxu0 0.0
  %86 = vmatprep.subr.mxu0 0.0
  %87 = vmatpush2.msra.mxu0 0.0
  %88 = vmatprep.subr.mxu0 0.0
  %89 = vmatpush2.msra.mxu0 0.0
  %90 = vmatprep.subr.mxu0 0.0
  %91 = vmatpush2.msra.mxu0 0.0
  %92 = vmatprep.subr.mxu0 0.0
  %93 = vmatpush2.msra.mxu0 0.0
  %94 = vmatprep.subr.mxu0 0.0
  %95 = vmatpush2.msra.mxu0 0.0
  %96 = vmatprep.subr.mxu0 0.0
  %97 = vmatpush2.msra.mxu0 0.0
  %98 = vmatprep.subr.mxu0 0.0
  %99 = vmatpush2.msra.mxu0 0.0
  %100 = vmatprep.subr.mxu0 0.0
  %101 = vmatpush2.msra.mxu0 0.0
  %102 = vmatprep.subr.mxu0 0.0
  %103 = vmatpush2.msra.mxu0 0.0
  %104 = vmatprep.mubr.f32.mxu0 0.0
  %105 = vmatmul.mubr.f32.gmra.mxu0 %v35
  %v106 = vpop.f32.mrf.mxu0
  %v107 = vadd.f32 %v31, %v106
  %v108 = vpop.f32.mrf.mxu0
  %109 = vmatprep.mubr.f32.mxu0 0.0
  %110 = vmatmul.mubr.f32.gmra.mxu0 %v38
  %v111 = vpop.f32.mrf.mxu0
  %v112 = vadd.f32 %v31, %v111
  %v113 = vpop.f32.mrf.mxu0
  %114 = vdwg.mxu0
  %v115 = vmax.f32 %v107, 0.0
  %v116 = vmax.f32 %v112, 0.0
  %v117 = vld [vmem:[%s3] sm:$0xff]
  %v118 = vld [vmem:[%s3 + $0x8] sm:$0xff]
  %v119 = vld [vmem:[%s3 + $0x10] sm:$0xff]
  %v120 = vld [vmem:[%s3 + $0x18] sm:$0xff]
  %v121 = vld [vmem:[%s3 + $0x20] sm:$0xff]
  %v122 = vld [vmem:[%s3 + $0x28] sm:$0xff]
  %v123 = vld [vmem:[%s3 + $0x30] sm:$0xff]
  %v124 = vld [vmem:[%s3 + $0x38] sm:$0xff]
  %v125 = vld [vmem:[%s3 + $0x40] sm:$0xff]
  %v126 = vld [vmem:[%s3 + $0x48] sm:$0xff]
  %v127 = vld [vmem:[%s3 + $0x50] sm:$0xff]
  %v128 = vld [vmem:[%s3 + $0x58] sm:$0xff]
  %v129 = vld [vmem:[%s3 + $0x60] sm:$0xff]
  %v130 = vld [vmem:[%s3 + $0x68] sm:$0xff]
  %v131 = vld [vmem:[%s3 + $0x70] sm:$0xff]
  %v132 = vld [vmem:[%s3 + $0x78] sm:$0xff]
  %v133 = vld [vmem:[%s4] sm:$0x1]
  %v135 = vlaneseq
  %v136 = vshrl.u32 %v135, 7
  %v137 = vsub.s32 0, %v136
  %v138 = vrot.slane %v133, %v137
  %140 = vmatprep.subr.mxu0 0.0
  %141 = vmatpush1.msra.mxu0 %v132
  %142 = vmatprep.subr.mxu0 0.0
  %143 = vmatpush1.msra.mxu0 %v131
  %144 = vmatprep.subr.mxu0 0.0
  %145 = vmatpush1.msra.mxu0 %v130
  %146 = vmatprep.subr.mxu0 0.0
  %147 = vmatpush1.msra.mxu0 %v129
  %148 = vmatprep.subr.mxu0 0.0
  %149 = vmatpush1.msra.mxu0 %v128
  %150 = vmatprep.subr.mxu0 0.0
  %151 = vmatpush1.msra.mxu0 %v127
  %152 = vmatprep.subr.mxu0 0.0
  %153 = vmatpush1.msra.mxu0 %v126
  %154 = vmatprep.subr.mxu0 0.0
  %155 = vmatpush1.msra.mxu0 %v125
  %156 = vmatprep.subr.mxu0 0.0
  %157 = vmatpush1.msra.mxu0 %v124
  %158 = vmatprep.subr.mxu0 0.0
  %159 = vmatpush1.msra.mxu0 %v123
  %160 = vmatprep.subr.mxu0 0.0
  %161 = vmatpush1.msra.mxu0 %v122
  %162 = vmatprep.subr.mxu0 0.0
  %163 = vmatpush1.msra.mxu0 %v121
  %164 = vmatprep.subr.mxu0 0.0
  %165 = vmatpush1.msra.mxu0 %v120
  %166 = vmatprep.subr.mxu0 0.0
  %167 = vmatpush1.msra.mxu0 %v119
  %168 = vmatprep.subr.mxu0 0.0
  %169 = vmatpush1.msra.mxu0 %v118
  %170 = vmatprep.subr.mxu0 0.0
  %171 = vmatpush1.msra.mxu0 %v117
  %172 = vmatprep.subr.mxu0 0.0
  %173 = vmatpush2.msra.mxu0 0.0
  %174 = vmatprep.subr.mxu0 0.0
  %175 = vmatpush2.msra.mxu0 0.0
  %176 = vmatprep.subr.mxu0 0.0
  %177 = vmatpush2.msra.mxu0 0.0
  %178 = vmatprep.subr.mxu0 0.0
  %179 = vmatpush2.msra.mxu0 0.0
  %180 = vmatprep.subr.mxu0 0.0
  %181 = vmatpush2.msra.mxu0 0.0
  %182 = vmatprep.subr.mxu0 0.0
  %183 = vmatpush2.msra.mxu0 0.0
  %184 = vmatprep.subr.mxu0 0.0
  %185 = vmatpush2.msra.mxu0 0.0
  %186 = vmatprep.subr.mxu0 0.0
  %187 = vmatpush2.msra.mxu0 0.0
  %188 = vmatprep.subr.mxu0 0.0
  %189 = vmatpush2.msra.mxu0 0.0
  %190 = vmatprep.subr.mxu0 0.0
  %191 = vmatpush2.msra.mxu0 0.0
  %192 = vmatprep.subr.mxu0 0.0
  %193 = vmatpush2.msra.mxu0 0.0
  %194 = vmatprep.subr.mxu0 0.0
  %195 = vmatpush2.msra.mxu0 0.0
  %196 = vmatprep.subr.mxu0 0.0
  %197 = vmatpush2.msra.mxu0 0.0
  %198 = vmatprep.subr.mxu0 0.0
  %199 = vmatpush2.msra.mxu0 0.0
  %200 = vmatprep.subr.mxu0 0.0
  %201 = vmatpush2.msra.mxu0 0.0
  %202 = vmatprep.subr.mxu0 0.0
  %203 = vmatpush2.msra.mxu0 0.0
  %204 = vmatprep.mubr.f32.mxu0 0.0
  %205 = vmatmul.mubr.f32.gmra.mxu0 %v115
  %v206 = vpop.f32.mrf.mxu0
  %v207 = vadd.f32 %v138, %v206
  %v208 = vpop.f32.mrf.mxu0
  %209 = vmatprep.mubr.f32.mxu0 0.0
  %210 = vmatmul.mubr.f32.gmra.mxu0 %v116
  %v211 = vpop.f32.mrf.mxu0
  %v212 = vadd.f32 %v138, %v211
  %v213 = vpop.f32.mrf.mxu0
  %214 = vdwg.mxu0
  %vm215 = vcmask 31744
  %216 = vst.msk [vmem:[%s5] sm:$0xff] %vm215, %v207
  %217 = vst.msk [vmem:[%s5 + $0x8] sm:$0xff] %vm215, %v212
  // Predicated region
  $region22: #{tpu_custom_call.1} parent=0 // pred_check
    _
  $region23: #{tpu_custom_call.1} parent=0 // pred_check_branch
    %219 = sbr.rel (0) target = $region25
  $region24: #{tpu_custom_call.1} parent=0 // pred_region
    _
  $region25: #{tpu_custom_call.1} parent=0 // pred_fallthru
    _
  // Predicated region
  $region26: #{tpu_custom_call.1} parent=0 // pred_check
    _
  $region27: #{tpu_custom_call.1} parent=0 // pred_check_branch
    %221 = sbr.rel (0) target = $region29
  $region28: #{tpu_custom_call.1} parent=0 // pred_region
    _
  $region29: #{tpu_custom_call.1} parent=0 // pred_fallthru
    _

</llo_original>
